<compile_context>
chip_gen: v5e
topology: v5e:2x2
jax: 0.10.0
libtpu: 0.0.40
codegen_flags: <defaults>
</compile_context>

<pallas_src>
import jax
import jax.numpy as jnp
from jax.experimental import pallas as pl
from jax.experimental.pallas import tpu as pltpu

_LANE = 128   # TPU lane width (last vreg dim)
_SUBL = 8     # TPU sublane width (second-to-last vreg dim)


# ---------------------------------------------------------------------------
# Kernel: one (tile_rows, 128) block per grid step, fully elementwise.
# ---------------------------------------------------------------------------
def _h_swish_kernel(x_ref, o_ref):
    v = x_ref[...]
    # x * relu6(x + 3) / 6  -- computed in the input dtype, like PyTorch.
    o_ref[...] = (v * jnp.clip(v + 3.0, 0.0, 6.0) / 6.0).astype(o_ref.dtype)


# ---------------------------------------------------------------------------
# Wrapper: accepts any shape / dtype, flattens to a lane-dense (rows, 128)
# view, tiles rows, and restores the original shape afterwards.
# ---------------------------------------------------------------------------
def h_swish_pallas(x, *, max_tile_rows=1024):
    orig_shape = x.shape
    dtype = x.dtype
    n = x.size

    # rows of 128 lanes, rounded up to a sublane multiple of 8.
    rows = pl.cdiv(n, _LANE)
    rows = pl.cdiv(rows, _SUBL) * _SUBL

    # Row tile: as large as possible up to max_tile_rows (multiple of 8 by
    # construction).  1024 rows * 128 lanes * 4 B = 512 KiB per block; with
    # double-buffered input + output that is ~2 MiB of VMEM -> safe on every
    # generation (v7x included).
    tile_rows = min(max_tile_rows, rows)

    # Pad the row count so every block is full (keeps stores unmasked and
    # avoids ragged-edge handling).  For sizes that already fit (e.g. the
    # test shape below) this is a no-op.
    rows_padded = pl.cdiv(rows, tile_rows) * tile_rows
    n_padded = rows_padded * _LANE

    flat = x.reshape(-1)
    if n_padded != n:
        flat = jnp.pad(flat, (0, n_padded - n))
    x2d = flat.reshape(rows_padded, _LANE)

    grid = (rows_padded // tile_rows,)
    out2d = pl.pallas_call(
        _h_swish_kernel,
        out_shape=jax.ShapeDtypeStruct((rows_padded, _LANE), dtype),
        grid=grid,
        in_specs=[pl.BlockSpec((tile_rows, _LANE), lambda i: (i, 0))],
        out_specs=pl.BlockSpec((tile_rows, _LANE), lambda i: (i, 0)),
        compiler_params=pltpu.CompilerParams(
            dimension_semantics=("parallel",)),
    )(x2d)

    return out2d.reshape(-1)[:n].reshape(orig_shape)


# ---------------------------------------------------------------------------
# Pure-JAX reference (mirrors the PyTorch graph exactly).
# ---------------------------------------------------------------------------
def h_swish_reference(x):
    return x * jnp.clip(x + 3.0, 0.0, 6.0) / 6.0


# ---------------------------------------------------------------------------
if __name__ == "__main__":
    key = jax.random.PRNGKey(0)
    k1, k2 = jax.random.split(key)

    # Main test: NCHW activation tensor, batch=2, channels=4, spatial=16x16.
    x = jax.random.normal(k1, (2, 4, 16, 16), jnp.float32) * 4.0
    out = jax.block_until_ready(h_swish_pallas(x))
    ref = jax.block_until_ready(h_swish_reference(x))
    assert out.shape == ref.shape and out.dtype == ref.dtype
    assert jnp.allclose(out, ref, rtol=1e-6, atol=1e-6), \
        f"max abs diff {float(jnp.max(jnp.abs(out - ref)))}"

    # Secondary test: ragged size (exercises padding) and a multi-step grid
    # (exercises the parallel pipeline path) via a small tile cap.
    x2 = jax.random.normal(k2, (2, 3, 33, 17), jnp.float32) * 4.0
    out2 = jax.block_until_ready(h_swish_pallas(x2, max_tile_rows=8))
    ref2 = jax.block_until_ready(h_swish_reference(x2))
    assert out2.shape == ref2.shape
    assert jnp.allclose(out2, ref2, rtol=1e-6, atol=1e-6), \
        f"max abs diff {float(jnp.max(jnp.abs(out2 - ref2)))}"

    print("KERNEL_OK")
</pallas_src>

<mosaic_0001>
module attributes {stable_mosaic.version = 11 : i64} {
  func.func @_h_swish_kernel(%arg0: i32, %arg1: memref<16x128xf32, #tpu.memory_space<vmem>>, %arg2: memref<16x128xf32, #tpu.memory_space<vmem>>) attributes {dimension_semantics = [#tpu.dimension_semantics<parallel>], iteration_bounds = array<i64: 1>, scalar_prefetch = 0 : i64, scratch_operands = 0 : i64, tpu.core_type = #tpu.core_type<tc>, window_params = [{transform_indices = @transform_0, window_bounds = array<i64: 16, 128>}, {transform_indices = @transform_1, window_bounds = array<i64: 16, 128>}]} {
    %c0 = arith.constant 0 : index
    %c0_0 = arith.constant 0 : index
    %0 = vector.load %arg1[%c0, %c0_0] : memref<16x128xf32, #tpu.memory_space<vmem>>, vector<16x128xf32>
    %cst = arith.constant 3.000000e+00 : f32
    %1 = vector.broadcast %cst : f32 to vector<16x128xf32>
    %2 = arith.addf %0, %1 : vector<16x128xf32>
    %cst_1 = arith.constant 0.000000e+00 : f32
    %cst_2 = arith.constant 6.000000e+00 : f32
    %3 = vector.broadcast %cst_1 : f32 to vector<16x128xf32>
    %4 = arith.maximumf %3, %2 : vector<16x128xf32>
    %5 = vector.broadcast %cst_2 : f32 to vector<16x128xf32>
    %6 = arith.minimumf %5, %4 : vector<16x128xf32>
    %7 = arith.mulf %0, %6 : vector<16x128xf32>
    %cst_3 = arith.constant 6.000000e+00 : f32
    %8 = vector.broadcast %cst_3 : f32 to vector<16x128xf32>
    %9 = arith.divf %7, %8 : vector<16x128xf32>
    %c0_4 = arith.constant 0 : index
    %c0_5 = arith.constant 0 : index
    %10 = vector.load %arg2[%c0_4, %c0_5] : memref<16x128xf32, #tpu.memory_space<vmem>>, vector<16x128xf32>
    tpu.vector_store %arg2[%c0_4, %c0_5], %9 {strides = array<i32>} : memref<16x128xf32, #tpu.memory_space<vmem>>, vector<16x128xf32>,
    return
  }
  func.func @transform_0(%arg0: i32) -> (i32, i32) {
    %c0_i32 = arith.constant 0 : i32
    %c0_i32_0 = arith.constant 0 : i32
    return %arg0, %c0_i32 : i32, i32
  }
  func.func @transform_1(%arg0: i32) -> (i32, i32) {
    %c0_i32 = arith.constant 0 : i32
    %c0_i32_0 = arith.constant 0 : i32
    return %arg0, %c0_i32 : i32, i32
  }
}

</mosaic_0001>

<llo_original>
// kernel: tpu_custom_call.1
$region0: #{tpu_custom_call.1}
  #allocation0 [shape = 'u32[]', space=smem, size = 0x4, offset = 0x4, fixed_abs, tag = 'smem constant byte address 0x4 - core index']
  #allocation1 [shape = 'u32[72,128]{1,0:T(1,128)}', space=vmem, size = 0x9000, scoped, tag = 'internal scratch']
  %s0 = inlined_call_operand.hbm [shape: f32[16,128], index: 0, kind: input, shape index: {}]
  %s1 = inlined_call_operand.hbm [shape: f32[16,128], index: 1, kind: output, shape index: {}]
  %s2 = sld [smem:[#allocation0]]
  $region18: #{tpu_custom_call.1} parent=0
    _
  %s4 = ssub.s32 1, %s2
  %s5 = scalar_select 0, %s4, %s2
  $region1: #{tpu_custom_call.1} parent=0
    #allocation2 [shape = 'u8[8192]{0}', space=vmem, size = 0x2000, scoped, tag = 'input window, operand 0, single buffered']
    #allocation3 [shape = 's32[1]{0}', space=sflag, size = 0x4, scoped, tag = 'scoped memory for tpu_custom_call.1']
    #allocation4 [shape = 's32[1]{0}', space=sflag, size = 0x4, scoped, tag = 'scoped memory for tpu_custom_call.1']
    #allocation5 [shape = 'u8[8192]{0}', space=vmem, size = 0x2000, scoped, tag = 'output window, operand 0, single buffered']
    %6 = vsyncpa [#allocation3], 0
    %7 = vsyncpa [#allocation4], 0
    // Predicated region
    $region2: #{tpu_custom_call.1} parent=1 // pred_check
      _
    $region3: #{tpu_custom_call.1} parent=1 // pred_check_branch
      %9 = sbr.rel (0) target = $region5
    $region4: #{tpu_custom_call.1} parent=1 // pred_region
      %11 = vsyncadd [#allocation3], 0
      %s12 = sshll.u32 %s0, 4
      %s13 = int_to_ptr.hbm [resolvable:$true] %s12
      %s14 = sshll.u32 [#allocation2], 4
      %s15 = int_to_ptr.vmem [resolvable:$true] %s14
      %20 = dma.hbm_to_vmem [thread:$0]  %s13, 256, %s15, [#allocation3], 128, 128, 8
    $region5: #{tpu_custom_call.1} parent=1 // pred_fallthru
      _
    // Predicated region
    $region6: #{tpu_custom_call.1} parent=1 // pred_check
      _
    $region7: #{tpu_custom_call.1} parent=1 // pred_check_branch
      %22 = sbr.rel (0) target = $region9
    $region8: #{tpu_custom_call.1} parent=1 // pred_region
      %24 = dma.done [#allocation3], 256
    $region9: #{tpu_custom_call.1} parent=1 // pred_fallthru
      _
    %v25 = vld [vmem:[#allocation2] sm:$0xff]
    %v26 = vld [vmem:[#allocation2 + $0x8] sm:$0xff]
    %v27 = vadd.f32 %v25, 3.0
    %v28 = vadd.f32 %v26, 3.0
    %v29 = vmax.f32 %v27, 0.0
    %v30 = vmax.f32 %v28, 0.0
    %v31 = vmin.f32 %v29, 6.0
    %v32 = vmin.f32 %v30, 6.0
    %v33 = vmul.f32 %v25, %v31
    %v34 = vmul.f32 %v26, %v32
    %v35 = vrcp.pop 6.0
    %v36 = vmul.f32 6.0, %v35
    %v37 = vsub.f32 1.0, %v36
    %v38 = vmul.f32 %v35, %v37
    %v39 = vadd.f32 %v35, %v38
    %vm40 = vweird.f32 %v35
    %v41 = vsel %vm40, %v35, %v39
    %v42 = vmul.f32 %v33, %v41
    %v43 = vmul.f32 %v34, %v41
    %44 = vst [vmem:[#allocation5] sm:$0xff] %v42
    %45 = vst [vmem:[#allocation5 + $0x8] sm:$0xff] %v43
    // Predicated region
    $region10: #{tpu_custom_call.1} parent=1 // pred_check
      _
    $region11: #{tpu_custom_call.1} parent=1 // pred_check_branch
      %47 = sbr.rel (0) target = $region13
    $region12: #{tpu_custom_call.1} parent=1 // pred_region
      %49 = vsyncadd [#allocation4], 0
      %s50 = sshll.u32 [#allocation5], 4
      %s51 = int_to_ptr.vmem [resolvable:$true] %s50
      %s52 = sshll.u32 %s1, 4
      %s53 = int_to_ptr.hbm [resolvable:$true] %s52
      %58 = dma.vmem_to_hbm [thread:$0]  %s51, 256, %s53, [#allocation4], 128, 128, 8
    $region13: #{tpu_custom_call.1} parent=1 // pred_fallthru
      _
    // Predicated region
    $region14: #{tpu_custom_call.1} parent=1 // pred_check
      _
    $region15: #{tpu_custom_call.1} parent=1 // pred_check_branch
      %60 = sbr.rel (0) target = $region17
    $region16: #{tpu_custom_call.1} parent=1 // pred_region
      %62 = dma.done [#allocation4], 256
    $region17: #{tpu_custom_call.1} parent=1 // pred_fallthru
      _
    %63 = vsyncpa [#allocation3], 1
    %64 = vsyncpa [#allocation4], 1

</llo_original>
